<compile_context>
chip_gen: v7x
topology: tpu7x:2x2x1
jax: 0.10.0
libtpu: 0.0.40
codegen_flags: <defaults>
</compile_context>

<pallas_src>
import functools

import jax
import jax.numpy as jnp
from jax import lax
from jax.experimental import pallas as pl
from jax.experimental.pallas import tpu as pltpu


def lora_linear_kernel(x_ref, w_ref, a_ref, b_ref, bias_ref, o_ref,
                       acc_ref, u_ref, *, scaling):
    """Grid = (M/tm, N/tn, K/tk); K (reduction) is the innermost axis.

    x_ref:    (tm, tk)   activations
    w_ref:    (tn, tk)   weight tile (nn.Linear layout: (out, in))
    a_ref:    (tn, r)    lora_A tile (rows of A picked by the N tile)
    b_ref:    (r, tk)    lora_B tile (columns of B picked by the K tile)
    bias_ref: (1, tn)
    o_ref:    (tm, tn)
    acc_ref:  (tm, tn) f32 scratch  (main matmul accumulator)
    u_ref:    (tm, r)  f32 scratch  (x @ B.T accumulator)
    """
    k = pl.program_id(2)

    @pl.when(k == 0)
    def _():
        acc_ref[...] = jnp.zeros_like(acc_ref)
        u_ref[...] = jnp.zeros_like(u_ref)

    # Contract over the last dim of both operands -> no transposed copies.
    dims = (((1,), (1,)), ((), ()))
    x = x_ref[...]
    acc_ref[...] += lax.dot_general(x, w_ref[...], dimension_numbers=dims,
                                    preferred_element_type=jnp.float32)
    # Tiny low-rank reduction: (tm, tk) x (r, tk) -> (tm, r)
    u_ref[...] += lax.dot_general(x, b_ref[...], dimension_numbers=dims,
                                  preferred_element_type=jnp.float32)

    @pl.when(k == pl.num_programs(2) - 1)
    def _():
        # (tm, r) x (tn, r) -> (tm, tn); applied once per output tile.
        low_rank = lax.dot_general(u_ref[...], a_ref[...],
                                   dimension_numbers=dims,
                                   preferred_element_type=jnp.float32)
        y = acc_ref[...] + scaling * low_rank + bias_ref[...].astype(jnp.float32)
        o_ref[...] = y.astype(o_ref.dtype)


def _tile(dim, target):
    """Full dim if it is small, otherwise the target tile (must divide dim)."""
    if dim <= target:
        return dim
    assert dim % target == 0, f"dim {dim} not divisible by tile {target}"
    return target


def lora_forward(x2d, weight, lora_A, lora_B, bias, scaling,
                 *, tm=256, tn=512, tk=512):
    """x2d: (M, in_dim); weight: (out_dim, in_dim); lora_A: (in_dim, r);
    lora_B: (r, out_dim); bias: (out_dim,). Returns (M, out_dim)."""
    M, in_dim = x2d.shape
    out_dim, in_dim_w = weight.shape
    assert in_dim == in_dim_w
    r = lora_A.shape[1]
    assert lora_A.shape == (in_dim, r)
    assert lora_B.shape == (r, out_dim)
    # The module's `W + scaling * (A @ B)` add is only shape-valid for square W.
    assert in_dim == out_dim, "LoRALayer semantics require in_dim == out_dim"

    tm = _tile(M, tm)
    tn = _tile(out_dim, tn)
    tk = _tile(in_dim, tk)
    grid = (M // tm, out_dim // tn, in_dim // tk)

    bias2d = bias.reshape(1, out_dim)

    flops = 2 * M * out_dim * in_dim + 2 * M * r * (in_dim + out_dim)
    bytes_accessed = (x2d.size * x2d.dtype.itemsize
                      + weight.size * weight.dtype.itemsize
                      + lora_A.size * lora_A.dtype.itemsize
                      + lora_B.size * lora_B.dtype.itemsize
                      + bias2d.size * bias2d.dtype.itemsize
                      + M * out_dim * x2d.dtype.itemsize)

    return pl.pallas_call(
        functools.partial(lora_linear_kernel, scaling=float(scaling)),
        out_shape=jax.ShapeDtypeStruct((M, out_dim), x2d.dtype),
        grid_spec=pltpu.PrefetchScalarGridSpec(
            num_scalar_prefetch=0,
            grid=grid,
            in_specs=[
                pl.BlockSpec((tm, tk), lambda i, j, k: (i, k)),   # x
                pl.BlockSpec((tn, tk), lambda i, j, k: (j, k)),   # weight
                pl.BlockSpec((tn, r), lambda i, j, k: (j, 0)),    # lora_A
                pl.BlockSpec((r, tk), lambda i, j, k: (0, k)),    # lora_B
                pl.BlockSpec((1, tn), lambda i, j, k: (0, j)),    # bias
            ],
            out_specs=pl.BlockSpec((tm, tn), lambda i, j, k: (i, j)),
            scratch_shapes=[
                pltpu.VMEM((tm, tn), jnp.float32),   # main accumulator
                pltpu.VMEM((tm, r), jnp.float32),    # x @ B.T accumulator
            ],
        ),
        compiler_params=pltpu.CompilerParams(
            dimension_semantics=("parallel", "parallel", "arbitrary"),
            vmem_limit_bytes=64 * 1024 * 1024),
        cost_estimate=pl.CostEstimate(flops=flops, transcendentals=0,
                                      bytes_accessed=bytes_accessed),
    )(x2d, weight, lora_A, lora_B, bias2d)


if __name__ == "__main__":
    # Config mirrors LoRA_Config: r=8, lora_alpha=16, lora_dropout=0.0
    r = 8
    lora_alpha = 16
    scaling = lora_alpha / r

    batch, seq, hidden = 2, 8, 32          # in_dim == out_dim == hidden
    in_dim = out_dim = hidden

    key = jax.random.PRNGKey(0)
    k_x, k_w, k_b, k_a, k_b2 = jax.random.split(key, 5)

    # original_layer (nn.Linear(hidden, hidden)) parameters, deterministic.
    weight = jax.random.normal(k_w, (out_dim, in_dim), jnp.float32) * 0.05
    bias = jax.random.normal(k_b, (out_dim,), jnp.float32) * 0.05

    # lora_A: kaiming_uniform_ on (in_dim, r) -> bound = sqrt(6 / r)
    bound = (6.0 / r) ** 0.5
    lora_A = jax.random.uniform(k_a, (in_dim, r), jnp.float32,
                                minval=-bound, maxval=bound)
    # lora_B: zeros, exactly as in the module's __init__.
    lora_B = jnp.zeros((r, out_dim), jnp.float32)

    x = jax.random.normal(k_x, (batch, seq, hidden), jnp.float32)
    x2d = x.reshape(batch * seq, in_dim)

    hi = jax.lax.Precision.HIGHEST

    def reference(B):
        w_prime = weight + scaling * jnp.matmul(lora_A, B, precision=hi)
        return jnp.matmul(x, w_prime.T, precision=hi) + bias

    # 1) Module-faithful run (lora_B == 0, as right after initialization).
    y = lora_forward(x2d, weight, lora_A, lora_B, bias, scaling)
    y = y.reshape(batch, seq, out_dim)
    jax.block_until_ready(y)
    assert jnp.allclose(y, reference(lora_B), atol=1e-4, rtol=1e-4), \
        "mismatch vs reference (lora_B = 0)"

    # 2) Exercise the low-rank path with a non-zero lora_B (post-training state).
    lora_B2 = jax.random.normal(k_b2, (r, out_dim), jnp.float32) * 0.05
    y2 = lora_forward(x2d, weight, lora_A, lora_B2, bias, scaling)
    y2 = y2.reshape(batch, seq, out_dim)
    jax.block_until_ready(y2)
    assert jnp.allclose(y2, reference(lora_B2), atol=1e-4, rtol=1e-4), \
        "mismatch vs reference (lora_B != 0)"

    print("KERNEL_OK")
</pallas_src>

<mosaic_0001>
module attributes {stable_mosaic.version = 11 : i64} {
  func.func @lora_linear_kernel(%arg0: i32, %arg1: i32, %arg2: i32, %arg3: memref<16x32xf32, #tpu.memory_space<vmem>>, %arg4: memref<32x32xf32, #tpu.memory_space<vmem>>, %arg5: memref<32x8xf32, #tpu.memory_space<vmem>>, %arg6: memref<8x32xf32, #tpu.memory_space<vmem>>, %arg7: memref<1x32xf32, #tpu.memory_space<vmem>>, %arg8: memref<16x32xf32, #tpu.memory_space<vmem>>, %arg9: memref<16x32xf32, #tpu.memory_space<vmem>>, %arg10: memref<16x8xf32, #tpu.memory_space<vmem>>) attributes {dimension_semantics = [#tpu.dimension_semantics<parallel>, #tpu.dimension_semantics<parallel>, #tpu.dimension_semantics<arbitrary>], iteration_bounds = array<i64: 1, 1, 1>, scalar_prefetch = 0 : i64, scratch_operands = 2 : i64, tpu.core_type = #tpu.core_type<tc>, window_params = [{transform_indices = @transform_0, window_bounds = array<i64: 16, 32>}, {transform_indices = @transform_1, window_bounds = array<i64: 32, 32>}, {transform_indices = @transform_2, window_bounds = array<i64: 32, 8>}, {transform_indices = @transform_3, window_bounds = array<i64: 8, 32>}, {transform_indices = @transform_4, window_bounds = array<i64: 1, 32>}, {transform_indices = @transform_5, window_bounds = array<i64: 16, 32>}]} {
    %c0_i32 = arith.constant 0 : i32
    %0 = arith.cmpi eq, %arg2, %c0_i32 : i32
    %1 = arith.extui %0 : i1 to i32
    %c0_i32_0 = arith.constant 0 : i32
    %2 = arith.cmpi ne, %1, %c0_i32_0 : i32
    scf.if %2 {
      %cst_17 = arith.constant 0.000000e+00 : f32
      %17 = vector.broadcast %cst_17 : f32 to vector<16x32xf32>
      %c0_18 = arith.constant 0 : index
      %c0_19 = arith.constant 0 : index
      %18 = vector.load %arg9[%c0_18, %c0_19] : memref<16x32xf32, #tpu.memory_space<vmem>>, vector<16x32xf32>
      tpu.vector_store %arg9[%c0_18, %c0_19], %17 {strides = array<i32>} : memref<16x32xf32, #tpu.memory_space<vmem>>, vector<16x32xf32>,
      %cst_20 = arith.constant 0.000000e+00 : f32
      %19 = vector.broadcast %cst_20 : f32 to vector<16x8xf32>
      %c0_21 = arith.constant 0 : index
      %c0_22 = arith.constant 0 : index
      %20 = vector.load %arg10[%c0_21, %c0_22] : memref<16x8xf32, #tpu.memory_space<vmem>>, vector<16x8xf32>
      tpu.vector_store %arg10[%c0_21, %c0_22], %19 {strides = array<i32>} : memref<16x8xf32, #tpu.memory_space<vmem>>, vector<16x8xf32>,
    } else {
    }
    %c0 = arith.constant 0 : index
    %c0_1 = arith.constant 0 : index
    %3 = vector.load %arg3[%c0, %c0_1] : memref<16x32xf32, #tpu.memory_space<vmem>>, vector<16x32xf32>
    %c0_2 = arith.constant 0 : index
    %c0_3 = arith.constant 0 : index
    %4 = vector.load %arg9[%c0_2, %c0_3] : memref<16x32xf32, #tpu.memory_space<vmem>>, vector<16x32xf32>
    %c0_4 = arith.constant 0 : index
    %c0_5 = arith.constant 0 : index
    %5 = vector.load %arg4[%c0_4, %c0_5] : memref<32x32xf32, #tpu.memory_space<vmem>>, vector<32x32xf32>
    %cst = arith.constant dense<0.000000e+00> : vector<16x32xf32>
    %6 = tpu.matmul %3, %5, %cst {dimension_numbers = #tpu.dot_dimension_numbers<[1], [1], [0], [0], [0, 0, 1, 0], [], []>} : vector<16x32xf32>, vector<32x32xf32>, vector<16x32xf32> -> vector<16x32xf32>
    %7 = arith.addf %4, %6 : vector<16x32xf32>
    %c0_6 = arith.constant 0 : index
    %c0_7 = arith.constant 0 : index
    %8 = vector.load %arg9[%c0_6, %c0_7] : memref<16x32xf32, #tpu.memory_space<vmem>>, vector<16x32xf32>
    tpu.vector_store %arg9[%c0_6, %c0_7], %7 {strides = array<i32>} : memref<16x32xf32, #tpu.memory_space<vmem>>, vector<16x32xf32>,
    %c0_8 = arith.constant 0 : index
    %c0_9 = arith.constant 0 : index
    %9 = vector.load %arg10[%c0_8, %c0_9] : memref<16x8xf32, #tpu.memory_space<vmem>>, vector<16x8xf32>
    %c0_10 = arith.constant 0 : index
    %c0_11 = arith.constant 0 : index
    %10 = vector.load %arg6[%c0_10, %c0_11] : memref<8x32xf32, #tpu.memory_space<vmem>>, vector<8x32xf32>
    %cst_12 = arith.constant dense<0.000000e+00> : vector<16x8xf32>
    %11 = tpu.matmul %3, %10, %cst_12 {dimension_numbers = #tpu.dot_dimension_numbers<[1], [1], [0], [0], [0, 0, 1, 0], [], []>} : vector<16x32xf32>, vector<8x32xf32>, vector<16x8xf32> -> vector<16x8xf32>
    %12 = arith.addf %9, %11 : vector<16x8xf32>
    %c0_13 = arith.constant 0 : index
    %c0_14 = arith.constant 0 : index
    %13 = vector.load %arg10[%c0_13, %c0_14] : memref<16x8xf32, #tpu.memory_space<vmem>>, vector<16x8xf32>
    tpu.vector_store %arg10[%c0_13, %c0_14], %12 {strides = array<i32>} : memref<16x8xf32, #tpu.memory_space<vmem>>, vector<16x8xf32>,
    %c0_i32_15 = arith.constant 0 : i32
    %14 = arith.cmpi eq, %arg2, %c0_i32_15 : i32
    %15 = arith.extui %14 : i1 to i32
    %c0_i32_16 = arith.constant 0 : i32
    %16 = arith.cmpi ne, %15, %c0_i32_16 : i32
    scf.if %16 {
      %c0_17 = arith.constant 0 : index
      %c0_18 = arith.constant 0 : index
      %17 = vector.load %arg10[%c0_17, %c0_18] : memref<16x8xf32, #tpu.memory_space<vmem>>, vector<16x8xf32>
      %c0_19 = arith.constant 0 : index
      %c0_20 = arith.constant 0 : index
      %18 = vector.load %arg5[%c0_19, %c0_20] : memref<32x8xf32, #tpu.memory_space<vmem>>, vector<32x8xf32>
      %cst_21 = arith.constant dense<0.000000e+00> : vector<16x32xf32>
      %19 = tpu.matmul %17, %18, %cst_21 {dimension_numbers = #tpu.dot_dimension_numbers<[1], [1], [0], [0], [0, 0, 1, 0], [], []>} : vector<16x8xf32>, vector<32x8xf32>, vector<16x32xf32> -> vector<16x32xf32>
      %c0_22 = arith.constant 0 : index
      %c0_23 = arith.constant 0 : index
      %20 = vector.load %arg9[%c0_22, %c0_23] : memref<16x32xf32, #tpu.memory_space<vmem>>, vector<16x32xf32>
      %cst_24 = arith.constant 2.000000e+00 : f32
      %21 = vector.broadcast %cst_24 : f32 to vector<16x32xf32>
      %22 = arith.mulf %21, %19 : vector<16x32xf32>
      %23 = arith.addf %20, %22 : vector<16x32xf32>
      %c0_25 = arith.constant 0 : index
      %c0_26 = arith.constant 0 : index
      %24 = vector.load %arg7[%c0_25, %c0_26] : memref<1x32xf32, #tpu.memory_space<vmem>>, vector<1x32xf32>
      %25 = vector.broadcast %24 : vector<1x32xf32> to vector<16x32xf32>
      %26 = arith.addf %23, %25 : vector<16x32xf32>
      %c0_27 = arith.constant 0 : index
      %c0_28 = arith.constant 0 : index
      %27 = vector.load %arg8[%c0_27, %c0_28] : memref<16x32xf32, #tpu.memory_space<vmem>>, vector<16x32xf32>
      tpu.vector_store %arg8[%c0_27, %c0_28], %26 {strides = array<i32>} : memref<16x32xf32, #tpu.memory_space<vmem>>, vector<16x32xf32>,
    } else {
    }
    return
  }
  func.func @transform_0(%arg0: i32, %arg1: i32, %arg2: i32) -> (i32, i32) {
    %c0_i32 = arith.constant 0 : i32
    return %arg0, %arg2 : i32, i32
  }
  func.func @transform_1(%arg0: i32, %arg1: i32, %arg2: i32) -> (i32, i32) {
    %c0_i32 = arith.constant 0 : i32
    return %arg1, %arg2 : i32, i32
  }
  func.func @transform_2(%arg0: i32, %arg1: i32, %arg2: i32) -> (i32, i32) {
    %c0_i32 = arith.constant 0 : i32
    %c0_i32_0 = arith.constant 0 : i32
    return %arg1, %c0_i32 : i32, i32
  }
  func.func @transform_3(%arg0: i32, %arg1: i32, %arg2: i32) -> (i32, i32) {
    %c0_i32 = arith.constant 0 : i32
    %c0_i32_0 = arith.constant 0 : i32
    return %c0_i32, %arg2 : i32, i32
  }
  func.func @transform_4(%arg0: i32, %arg1: i32, %arg2: i32) -> (i32, i32) {
    %c0_i32 = arith.constant 0 : i32
    %c0_i32_0 = arith.constant 0 : i32
    return %c0_i32, %arg1 : i32, i32
  }
  func.func @transform_5(%arg0: i32, %arg1: i32, %arg2: i32) -> (i32, i32) {
    %c0_i32 = arith.constant 0 : i32
    return %arg0, %arg1 : i32, i32
  }
}

</mosaic_0001>

<llo_original>
// kernel: tpu_custom_call.1
$region0: #{tpu_custom_call.1}
  #allocation0 [shape = 'u32[]', space=smem, size = 0x4, offset = 0x4, fixed_abs, tag = 'smem constant byte address 0x4 - core index']
  #allocation1 [shape = 'u32[144,128]{1,0:T(1,128)}', space=vmem, size = 0x12000, scoped, tag = 'internal scratch']
  #allocation2 [shape = 'f32[16,32]{1,0:T(8,128)}', space=vmem, size = 0x2000, scoped, tag = 'scratch operand']
  #allocation3 [shape = 'f32[16,8]{1,0:T(8,128)}', space=vmem, size = 0x2000, scoped, tag = 'scratch operand']
  %s0 = inlined_call_operand.hbm [shape: f32[16,32], index: 0, kind: input, shape index: {}]
  %s1 = inlined_call_operand.hbm [shape: f32[32,32], index: 1, kind: input, shape index: {}]
  %s2 = inlined_call_operand.hbm [shape: f32[32,8], index: 2, kind: input, shape index: {}]
  %s3 = inlined_call_operand.hbm [shape: f32[8,32], index: 3, kind: input, shape index: {}]
  %s4 = inlined_call_operand.hbm [shape: f32[1,32], index: 4, kind: input, shape index: {}]
  %s5 = inlined_call_operand.hbm [shape: f32[16,32], index: 5, kind: output, shape index: {}]
  %s6 = sld [smem:[#allocation0]]
  $region58: #{tpu_custom_call.1} parent=0
    _
  %s8 = ssub.s32 1, %s6
  %s9 = scalar_select 0, %s8, %s6
  $region1: #{tpu_custom_call.1} parent=0
    #allocation4 [shape = 'u8[8192]{0}', space=vmem, size = 0x2000, scoped, tag = 'input window, operand 0, single buffered']
    #allocation5 [shape = 's32[1]{0}', space=sflag, size = 0x4, scoped, tag = 'scoped memory for tpu_custom_call.1']
    #allocation6 [shape = 's32[1]{0}', space=sflag, size = 0x4, scoped, tag = 'scoped memory for tpu_custom_call.1']
    #allocation7 [shape = 'u8[16384]{0}', space=vmem, size = 0x4000, scoped, tag = 'input window, operand 1, single buffered']
    #allocation8 [shape = 's32[1]{0}', space=sflag, size = 0x4, scoped, tag = 'scoped memory for tpu_custom_call.1']
    #allocation9 [shape = 'u8[16384]{0}', space=vmem, size = 0x4000, scoped, tag = 'input window, operand 2, single buffered']
    #allocation10 [shape = 'u8[4096]{0}', space=vmem, size = 0x1000, scoped, tag = 'input window, operand 3, single buffered']
    #allocation11 [shape = 's32[1]{0}', space=sflag, size = 0x4, scoped, tag = 'scoped memory for tpu_custom_call.1']
    #allocation12 [shape = 'u8[512]{0}', space=vmem, size = 0x400, scoped, tag = 'input window, operand 4, single buffered']
    #allocation13 [shape = 'u8[8192]{0}', space=vmem, size = 0x2000, scoped, tag = 'output window, operand 0, single buffered']
    %10 = vsyncpa [#allocation5], 0
    %11 = vsyncpa [#allocation8], 0
    %12 = vsyncpa [#allocation11], 0
    %13 = vsyncpa [#allocation6], 0
    // Predicated region
    $region2: #{tpu_custom_call.1} parent=1 // pred_check
      _
    $region3: #{tpu_custom_call.1} parent=1 // pred_check_branch
      %15 = sbr.rel (0) target = $region5
    $region4: #{tpu_custom_call.1} parent=1 // pred_region
      %s17 = ssub.s32 256, 256
      %18 = vsyncadd [#allocation5], %s17
      %s19 = sshll.u32 [#allocation4], 4
      %s20 = int_to_ptr.vmem [resolvable:$true] %s19
      %25 = dma.hbm_to_vmem [thread:$0]  %s0, 256, %s20, [#allocation5], 128, 128, 8
    $region5: #{tpu_custom_call.1} parent=1 // pred_fallthru
      _
    // Predicated region
    $region6: #{tpu_custom_call.1} parent=1 // pred_check
      _
    $region7: #{tpu_custom_call.1} parent=1 // pred_check_branch
      %27 = sbr.rel (0) target = $region9
    $region8: #{tpu_custom_call.1} parent=1 // pred_region
      %s29 = ssub.s32 512, 512
      %30 = vsyncadd [#allocation8], %s29
      %s31 = sshll.u32 [#allocation7], 4
      %s32 = int_to_ptr.vmem [resolvable:$true] %s31
      %37 = dma.hbm_to_vmem [thread:$0]  %s1, 512, %s32, [#allocation8], 128, 128, 8
    $region9: #{tpu_custom_call.1} parent=1 // pred_fallthru
      _
    // Predicated region
    $region10: #{tpu_custom_call.1} parent=1 // pred_check
      _
    $region11: #{tpu_custom_call.1} parent=1 // pred_check_branch
      %39 = sbr.rel (0) target = $region13
    $region12: #{tpu_custom_call.1} parent=1 // pred_region
      %s41 = ssub.s32 512, 512
      %42 = vsyncadd [#allocation8], %s41
      %s43 = sshll.u32 [#allocation9], 4
      %s44 = int_to_ptr.vmem [resolvable:$true] %s43
      %49 = dma.hbm_to_vmem [thread:$0]  %s2, 512, %s44, [#allocation8], 128, 128, 8
    $region13: #{tpu_custom_call.1} parent=1 // pred_fallthru
      _
    // Predicated region
    $region14: #{tpu_custom_call.1} parent=1 // pred_check
      _
    $region15: #{tpu_custom_call.1} parent=1 // pred_check_branch
      %51 = sbr.rel (0) target = $region17
    $region16: #{tpu_custom_call.1} parent=1 // pred_region
      %s53 = ssub.s32 128, 128
      %54 = vsyncadd [#allocation11], %s53
      %s56 = sshll.u32 [#allocation10], 4
      %s57 = int_to_ptr.vmem [resolvable:$true] %s56
      %59 = dma.hbm_to_vmem [thread:$0]  %s3, 128, %s57, [#allocation11]
    $region17: #{tpu_custom_call.1} parent=1 // pred_fallthru
      _
    // Predicated region
    $region18: #{tpu_custom_call.1} parent=1 // pred_check
      _
    $region19: #{tpu_custom_call.1} parent=1 // pred_check_branch
      %61 = sbr.rel (0) target = $region21
    $region20: #{tpu_custom_call.1} parent=1 // pred_region
      %s63 = ssub.s32 16, 16
      %64 = vsyncadd [#allocation11], %s63
      %s66 = sshll.u32 [#allocation12], 4
      %s67 = int_to_ptr.vmem [resolvable:$true] %s66
      %69 = dma.hbm_to_vmem [thread:$0]  %s4, 16, %s67, [#allocation11]
    $region21: #{tpu_custom_call.1} parent=1 // pred_fallthru
      _
    // Predicated region
    $region22: #{tpu_custom_call.1} parent=1 // pred_check
      _
    $region23: #{tpu_custom_call.1} parent=1 // pred_check_branch
      %71 = sbr.rel (0) target = $region25
    $region24: #{tpu_custom_call.1} parent=1 // pred_region
      %72 = dma.done [#allocation5], 256
    $region25: #{tpu_custom_call.1} parent=1 // pred_fallthru
      _
    // Predicated region
    $region26: #{tpu_custom_call.1} parent=1 // pred_check
      _
    $region27: #{tpu_custom_call.1} parent=1 // pred_check_branch
      %74 = sbr.rel (0) target = $region29
    $region28: #{tpu_custom_call.1} parent=1 // pred_region
      %75 = dma.done [#allocation8], 512
    $region29: #{tpu_custom_call.1} parent=1 // pred_fallthru
      _
    // Predicated region
    $region30: #{tpu_custom_call.1} parent=1 // pred_check
      _
    $region31: #{tpu_custom_call.1} parent=1 // pred_check_branch
      %77 = sbr.rel (0) target = $region33
    $region32: #{tpu_custom_call.1} parent=1 // pred_region
      %78 = dma.done [#allocation8], 512
    $region33: #{tpu_custom_call.1} parent=1 // pred_fallthru
      _
    // Predicated region
    $region34: #{tpu_custom_call.1} parent=1 // pred_check
      _
    $region35: #{tpu_custom_call.1} parent=1 // pred_check_branch
      %80 = sbr.rel (0) target = $region37
    $region36: #{tpu_custom_call.1} parent=1 // pred_region
      %81 = dma.done [#allocation11], 128
    $region37: #{tpu_custom_call.1} parent=1 // pred_fallthru
      _
    // Predicated region
    $region38: #{tpu_custom_call.1} parent=1 // pred_check
      _
    $region39: #{tpu_custom_call.1} parent=1 // pred_check_branch
      %83 = sbr.rel (0) target = $region41
    $region40: #{tpu_custom_call.1} parent=1 // pred_region
      %84 = dma.done [#allocation11], 16
    $region41: #{tpu_custom_call.1} parent=1 // pred_fallthru
      _
    %p85 = scmp.eq.s32.totalorder 0, 0
    // Predicated region
    $region42: #{tpu_custom_call.1} parent=1 // pred_check
      %p86 = pneg %p85
    $region43: #{tpu_custom_call.1} parent=1 // pred_check_branch
      %88 = sbr.rel (%p86) target = $region45
    $region44: #{tpu_custom_call.1} parent=1 // pred_region
      %vm89 = vcmask 261120
      %90 = vst.msk [vmem:[#allocation2] sm:$0xff] %vm89, 0.0
      %91 = vst.msk [vmem:[#allocation2 + $0x8] sm:$0xff] %vm89, 0.0
      %vm92 = vcmask 64512
      %93 = vst.msk [vmem:[#allocation3] sm:$0xff] %vm92, 0.0
      %94 = vst.msk [vmem:[#allocation3 + $0x8] sm:$0xff] %vm92, 0.0
    $region45: #{tpu_custom_call.1} parent=1 // pred_fallthru
      _
    %v95 = vld [vmem:[#allocation4] sm:$0xff]
    %v96 = vld [vmem:[#allocation4 + $0x8] sm:$0xff]
    %v97 = vld [vmem:[#allocation2] sm:$0xff]
    %v98 = vld [vmem:[#allocation2 + $0x8] sm:$0xff]
    %v99 = vld [vmem:[#allocation7] sm:$0xff]
    %v100 = vld [vmem:[#allocation7 + $0x8] sm:$0xff]
    %v101 = vld [vmem:[#allocation7 + $0x10] sm:$0xff]
    %v102 = vld [vmem:[#allocation7 + $0x18] sm:$0xff]
    %vm103 = vcmask 261120
    %v105 = vsel %vm103, %v95, 0
    %v108 = vsel %vm103, %v96, 0
    %v111 = vsel %vm103, %v99, 0
    %v114 = vsel %vm103, %v100, 0
    %v117 = vsel %vm103, %v101, 0
    %v120 = vsel %vm103, %v102, 0
    %122 = vmatprep.subr.mxu0 0.0
    %123 = vmatpush1.xpose.msra.mxu0 %v111
    %124 = vmatprep.subr.mxu0 0.0
    %125 = vmatpush1.xpose.msra.mxu0 %v114
    %126 = vmatprep.subr.mxu0 0.0
    %127 = vmatpush1.xpose.msra.mxu0 %v117
    %128 = vmatprep.subr.mxu0 0.0
    %129 = vmatpush1.xpose.msra.mxu0 %v120
    %130 = vmatprep.subr.mxu0 0.0
    %131 = vmatpush1.xpose.msra.mxu0 0.0
    %132 = vmatprep.subr.mxu0 0.0
    %133 = vmatpush1.xpose.msra.mxu0 0.0
    %134 = vmatprep.subr.mxu0 0.0
    %135 = vmatpush1.xpose.msra.mxu0 0.0
    %136 = vmatprep.subr.mxu0 0.0
    %137 = vmatpush1.xpose.msra.mxu0 0.0
    %138 = vmatprep.subr.mxu0 0.0
    %139 = vmatpush1.xpose.msra.mxu0 0.0
    %140 = vmatprep.subr.mxu0 0.0
    %141 = vmatpush1.xpose.msra.mxu0 0.0
    %142 = vmatprep.subr.mxu0 0.0
    %143 = vmatpush1.xpose.msra.mxu0 0.0
    %144 = vmatprep.subr.mxu0 0.0
    %145 = vmatpush1.xpose.msra.mxu0 0.0
    %146 = vmatprep.subr.mxu0 0.0
    %147 = vmatpush1.xpose.msra.mxu0 0.0
    %148 = vmatprep.subr.mxu0 0.0
    %149 = vmatpush1.xpose.msra.mxu0 0.0
    %150 = vmatprep.subr.mxu0 0.0
    %151 = vmatpush1.xpose.msra.mxu0 0.0
    %152 = vmatprep.subr.mxu0 0.0
    %153 = vmatpush1.xpose.msra.mxu0 0.0
    %154 = vmatprep.subr.mxu0 0.0
    %155 = vmatpush1.xpose.msra.mxu0 0.0
    %156 = vmatprep.subr.mxu0 0.0
    %157 = vmatpush1.xpose.msra.mxu0 0.0
    %158 = vmatprep.subr.mxu0 0.0
    %159 = vmatpush1.xpose.msra.mxu0 0.0
    %160 = vmatprep.subr.mxu0 0.0
    %161 = vmatpush1.xpose.msra.mxu0 0.0
    %162 = vmatprep.subr.mxu0 0.0
    %163 = vmatpush1.xpose.msra.mxu0 0.0
    %164 = vmatprep.subr.mxu0 0.0
    %165 = vmatpush1.xpose.msra.mxu0 0.0
    %166 = vmatprep.subr.mxu0 0.0
    %167 = vmatpush1.xpose.msra.mxu0 0.0
    %168 = vmatprep.subr.mxu0 0.0
    %169 = vmatpush1.xpose.msra.mxu0 0.0
    %170 = vmatprep.subr.mxu0 0.0
    %171 = vmatpush1.xpose.msra.mxu0 0.0
    %172 = vmatprep.subr.mxu0 0.0
    %173 = vmatpush1.xpose.msra.mxu0 0.0
    %174 = vmatprep.subr.mxu0 0.0
    %175 = vmatpush1.xpose.msra.mxu0 0.0
    %176 = vmatprep.subr.mxu0 0.0
    %177 = vmatpush1.xpose.msra.mxu0 0.0
    %178 = vmatprep.subr.mxu0 0.0
    %179 = vmatpush1.xpose.msra.mxu0 0.0
    %180 = vmatprep.subr.mxu0 0.0
    %181 = vmatpush1.xpose.msra.mxu0 0.0
    %182 = vmatprep.subr.mxu0 0.0
    %183 = vmatpush1.xpose.msra.mxu0 0.0
    %184 = vmatprep.subr.mxu0 0.0
    %185 = vmatpush1.xpose.msra.mxu0 0.0
    %186 = vmatprep.mubr.f32.mxu0 0.0
    %187 = vmatmul.mubr.f32.gmra.mrb[0].mxu0 %v105
    %v188 = vpop.f32.mrb[0].mxu0
    %v189 = vadd.f32 0.0, %v188
    %v190 = vpop.f32.mrb[0].mxu0
    %191 = vmatprep.mubr.f32.mxu0 0.0
    %192 = vmatmul.mubr.f32.gmra.mrb[0].mxu0 %v108
    %v193 = vpop.f32.mrb[0].mxu0
    %v194 = vadd.f32 0.0, %v193
    %v195 = vpop.f32.mrb[0].mxu0
    %196 = vdwg.mxu0
    %v197 = vadd.f32 %v97, %v189
    %v198 = vadd.f32 %v98, %v194
    %199 = vst.msk [vmem:[#allocation2] sm:$0xff] %vm103, %v197
    %200 = vst.msk [vmem:[#allocation2 + $0x8] sm:$0xff] %vm103, %v198
    %v201 = vld [vmem:[#allocation3] sm:$0xff]
    %v202 = vld [vmem:[#allocation3 + $0x8] sm:$0xff]
    %v203 = vld [vmem:[#allocation10] sm:$0xff]
    %v205 = vsel %vm103, %v203, 0
    %207 = vmatprep.subr.mxu0 0.0
    %208 = vmatpush1.xpose.msra.mxu0 %v205
    %209 = vmatprep.subr.mxu0 0.0
    %210 = vmatpush1.xpose.msra.mxu0 0.0
    %211 = vmatprep.subr.mxu0 0.0
    %212 = vmatpush1.xpose.msra.mxu0 0.0
    %213 = vmatprep.subr.mxu0 0.0
    %214 = vmatpush1.xpose.msra.mxu0 0.0
    %215 = vmatprep.subr.mxu0 0.0
    %216 = vmatpush1.xpose.msra.mxu0 0.0
    %217 = vmatprep.subr.mxu0 0.0
    %218 = vmatpush1.xpose.msra.mxu0 0.0
    %219 = vmatprep.subr.mxu0 0.0
    %220 = vmatpush1.xpose.msra.mxu0 0.0
    %221 = vmatprep.subr.mxu0 0.0
    %222 = vmatpush1.xpose.msra.mxu0 0.0
    %223 = vmatprep.subr.mxu0 0.0
    %224 = vmatpush1.xpose.msra.mxu0 0.0
    %225 = vmatprep.subr.mxu0 0.0
    %226 = vmatpush1.xpose.msra.mxu0 0.0
    %227 = vmatprep.subr.mxu0 0.0
    %228 = vmatpush1.xpose.msra.mxu0 0.0
    %229 = vmatprep.subr.mxu0 0.0
    %230 = vmatpush1.xpose.msra.mxu0 0.0
    %231 = vmatprep.subr.mxu0 0.0
    %232 = vmatpush1.xpose.msra.mxu0 0.0
    %233 = vmatprep.subr.mxu0 0.0
    %234 = vmatpush1.xpose.msra.mxu0 0.0
    %235 = vmatprep.subr.mxu0 0.0
    %236 = vmatpush1.xpose.msra.mxu0 0.0
    %237 = vmatprep.subr.mxu0 0.0
    %238 = vmatpush1.xpose.msra.mxu0 0.0
    %239 = vmatprep.subr.mxu0 0.0
    %240 = vmatpush1.xpose.msra.mxu0 0.0
    %241 = vmatprep.subr.mxu0 0.0
    %242 = vmatpush1.xpose.msra.mxu0 0.0
    %243 = vmatprep.subr.mxu0 0.0
    %244 = vmatpush1.xpose.msra.mxu0 0.0
    %245 = vmatprep.subr.mxu0 0.0
    %246 = vmatpush1.xpose.msra.mxu0 0.0
    %247 = vmatprep.subr.mxu0 0.0
    %248 = vmatpush1.xpose.msra.mxu0 0.0
    %249 = vmatprep.subr.mxu0 0.0
    %250 = vmatpush1.xpose.msra.mxu0 0.0
    %251 = vmatprep.subr.mxu0 0.0
    %252 = vmatpush1.xpose.msra.mxu0 0.0
    %253 = vmatprep.subr.mxu0 0.0
    %254 = vmatpush1.xpose.msra.mxu0 0.0
    %255 = vmatprep.subr.mxu0 0.0
    %256 = vmatpush1.xpose.msra.mxu0 0.0
    %257 = vmatprep.subr.mxu0 0.0
    %258 = vmatpush1.xpose.msra.mxu0 0.0
    %259 = vmatprep.subr.mxu0 0.0
    %260 = vmatpush1.xpose.msra.mxu0 0.0
    %261 = vmatprep.subr.mxu0 0.0
    %262 = vmatpush1.xpose.msra.mxu0 0.0
    %263 = vmatprep.subr.mxu0 0.0
    %264 = vmatpush1.xpose.msra.mxu0 0.0
    %265 = vmatprep.subr.mxu0 0.0
    %266 = vmatpush1.xpose.msra.mxu0 0.0
    %267 = vmatprep.subr.mxu0 0.0
    %268 = vmatpush1.xpose.msra.mxu0 0.0
    %269 = vmatprep.subr.mxu0 0.0
    %270 = vmatpush1.xpose.msra.mxu0 0.0
    %271 = vmatprep.mubr.f32.mxu0 0.0
    %272 = vmatmul.mubr.f32.gmra.mrb[0].mxu0 %v105
    %v273 = vpop.f32.mrb[0].mxu0
    %v274 = vadd.f32 0.0, %v273
    %v275 = vpop.f32.mrb[0].mxu0
    %276 = vmatprep.mubr.f32.mxu0 0.0
    %277 = vmatmul.mubr.f32.gmra.mrb[0].mxu0 %v108
    %v278 = vpop.f32.mrb[0].mxu0
    %v279 = vadd.f32 0.0, %v278
    %v280 = vpop.f32.mrb[0].mxu0
    %281 = vdwg.mxu0
    %v282 = vadd.f32 %v201, %v274
    %v283 = vadd.f32 %v202, %v279
    %vm284 = vcmask 64512
    %285 = vst.msk [vmem:[#allocation3] sm:$0xff] %vm284, %v282
    %286 = vst.msk [vmem:[#allocation3 + $0x8] sm:$0xff] %vm284, %v283
    // Predicated region
    $region46: #{tpu_custom_call.1} parent=1 // pred_check
      %p287 = pneg %p85
    $region47: #{tpu_custom_call.1} parent=1 // pred_check_branch
      %289 = sbr.rel (%p287) target = $region49
    $region48: #{tpu_custom_call.1} parent=1 // pred_region
      %v290 = vld [vmem:[#allocation3] sm:$0xff]
      %v291 = vld [vmem:[#allocation3 + $0x8] sm:$0xff]
      %v292 = vld [vmem:[#allocation9] sm:$0xff]
      %v293 = vld [vmem:[#allocation9 + $0x8] sm:$0xff]
      %v294 = vld [vmem:[#allocation9 + $0x10] sm:$0xff]
      %v295 = vld [vmem:[#allocation9 + $0x18] sm:$0xff]
      %v297 = vsel %vm284, %v290, 0
      %v300 = vsel %vm284, %v291, 0
      %v303 = vsel %vm284, %v292, 0
      %v306 = vsel %vm284, %v293, 0
      %v309 = vsel %vm284, %v294, 0
      %v312 = vsel %vm284, %v295, 0
      %314 = vmatprep.subr.mxu0 0.0
      %315 = vmatpush1.xpose.msra.mxu0 %v303
      %316 = vmatprep.subr.mxu0 0.0
      %317 = vmatpush1.xpose.msra.mxu0 %v306
      %318 = vmatprep.subr.mxu0 0.0
      %319 = vmatpush1.xpose.msra.mxu0 %v309
      %320 = vmatprep.subr.mxu0 0.0
      %321 = vmatpush1.xpose.msra.mxu0 %v312
      %322 = vmatprep.subr.mxu0 0.0
      %323 = vmatpush1.xpose.msra.mxu0 0.0
      %324 = vmatprep.subr.mxu0 0.0
      %325 = vmatpush1.xpose.msra.mxu0 0.0
      %326 = vmatprep.subr.mxu0 0.0
      %327 = vmatpush1.xpose.msra.mxu0 0.0
      %328 = vmatprep.subr.mxu0 0.0
      %329 = vmatpush1.xpose.msra.mxu0 0.0
      %330 = vmatprep.subr.mxu0 0.0
      %331 = vmatpush1.xpose.msra.mxu0 0.0
      %332 = vmatprep.subr.mxu0 0.0
      %333 = vmatpush1.xpose.msra.mxu0 0.0
      %334 = vmatprep.subr.mxu0 0.0
      %335 = vmatpush1.xpose.msra.mxu0 0.0
      %336 = vmatprep.subr.mxu0 0.0
      %337 = vmatpush1.xpose.msra.mxu0 0.0
      %338 = vmatprep.subr.mxu0 0.0
      %339 = vmatpush1.xpose.msra.mxu0 0.0
      %340 = vmatprep.subr.mxu0 0.0
      %341 = vmatpush1.xpose.msra.mxu0 0.0
      %342 = vmatprep.subr.mxu0 0.0
      %343 = vmatpush1.xpose.msra.mxu0 0.0
      %344 = vmatprep.subr.mxu0 0.0
      %345 = vmatpush1.xpose.msra.mxu0 0.0
      %346 = vmatprep.subr.mxu0 0.0
      %347 = vmatpush1.xpose.msra.mxu0 0.0
      %348 = vmatprep.subr.mxu0 0.0
      %349 = vmatpush1.xpose.msra.mxu0 0.0
      %350 = vmatprep.subr.mxu0 0.0
      %351 = vmatpush1.xpose.msra.mxu0 0.0
      %352 = vmatprep.subr.mxu0 0.0
      %353 = vmatpush1.xpose.msra.mxu0 0.0
      %354 = vmatprep.subr.mxu0 0.0
      %355 = vmatpush1.xpose.msra.mxu0 0.0
      %356 = vmatprep.subr.mxu0 0.0
      %357 = vmatpush1.xpose.msra.mxu0 0.0
      %358 = vmatprep.subr.mxu0 0.0
      %359 = vmatpush1.xpose.msra.mxu0 0.0
      %360 = vmatprep.subr.mxu0 0.0
      %361 = vmatpush1.xpose.msra.mxu0 0.0
      %362 = vmatprep.subr.mxu0 0.0
      %363 = vmatpush1.xpose.msra.mxu0 0.0
      %364 = vmatprep.subr.mxu0 0.0
      %365 = vmatpush1.xpose.msra.mxu0 0.0
      %366 = vmatprep.subr.mxu0 0.0
      %367 = vmatpush1.xpose.msra.mxu0 0.0
      %368 = vmatprep.subr.mxu0 0.0
      %369 = vmatpush1.xpose.msra.mxu0 0.0
      %370 = vmatprep.subr.mxu0 0.0
      %371 = vmatpush1.xpose.msra.mxu0 0.0
      %372 = vmatprep.subr.mxu0 0.0
      %373 = vmatpush1.xpose.msra.mxu0 0.0
      %374 = vmatprep.subr.mxu0 0.0
      %375 = vmatpush1.xpose.msra.mxu0 0.0
      %376 = vmatprep.subr.mxu0 0.0
      %377 = vmatpush1.xpose.msra.mxu0 0.0
      %378 = vmatprep.mubr.f32.mxu0 0.0
      %379 = vmatmul.mubr.f32.gmra.mrb[0].mxu0 %v297
      %v380 = vpop.f32.mrb[0].mxu0
      %v381 = vadd.f32 0.0, %v380
      %v382 = vpop.f32.mrb[0].mxu0
      %383 = vmatprep.mubr.f32.mxu0 0.0
      %384 = vmatmul.mubr.f32.gmra.mrb[0].mxu0 %v300
      %v385 = vpop.f32.mrb[0].mxu0
      %v386 = vadd.f32 0.0, %v385
      %v387 = vpop.f32.mrb[0].mxu0
      %388 = vdwg.mxu0
      %v389 = vld [vmem:[#allocation2] sm:$0xff]
      %v390 = vld [vmem:[#allocation2 + $0x8] sm:$0xff]
      %v391 = vmul.f32 %v381, 2.0
      %v392 = vmul.f32 %v386, 2.0
      %v393 = vadd.f32 %v389, %v391
      %v394 = vadd.f32 %v390, %v392
      %v395 = vld [vmem:[#allocation12] sm:$0x1]
      %v397 = vlaneseq
      %v398 = vshrl.u32 %v397, 7
      %v399 = vsub.s32 0, %v398
      %v400 = vrot.slane %v395, %v399
      %v402 = vadd.f32 %v393, %v400
      %v403 = vadd.f32 %v394, %v400
      %404 = vst.msk [vmem:[#allocation13] sm:$0xff] %vm103, %v402
      %405 = vst.msk [vmem:[#allocation13 + $0x8] sm:$0xff] %vm103, %v403
    $region49: #{tpu_custom_call.1} parent=1 // pred_fallthru
      _
    // Predicated region
    $region50: #{tpu_custom_call.1} parent=1 // pred_check
      _
    $region51: #{tpu_custom_call.1} parent=1 // pred_check_branch
      %407 = sbr.rel (0) target = $region53
    $region52: #{tpu_custom_call.1} parent=1 // pred_region
      %s409 = ssub.s32 256, 256
      %410 = vsyncadd [#allocation6], %s409
      %s411 = sshll.u32 [#allocation13], 4
      %s412 = int_to_ptr.vmem [resolvable:$true] %s411
      %417 = dma.vmem_to_hbm [thread:$0]  %s412, 256, %s5, [#allocation6], 128, 128, 8
    $region53: #{tpu_custom_call.1} parent=1 // pred_fallthru
      _
    // Predicated region
    $region54: #{tpu_custom_call.1} parent=1 // pred_check
      _
    $region55: #{tpu_custom_call.1} parent=1 // pred_check_branch
      %419 = sbr.rel (0) target = $region57
    $region56: #{tpu_custom_call.1} parent=1 // pred_region
      %420 = dma.done [#allocation6], 256
    $region57: #{tpu_custom_call.1} parent=1 // pred_fallthru
      _
    %421 = vsyncpa [#allocation5], 1
    %422 = vsyncpa [#allocation8], 1
    %423 = vsyncpa [#allocation11], 1
    %424 = vsyncpa [#allocation6], 1

</llo_original>
